<compile_context>
chip_gen: v7x
topology: tpu7x:2x2x1
jax: 0.10.0
libtpu: 0.0.40
codegen_flags: <defaults>
</compile_context>

<pallas_src>
import functools

import jax
import jax.numpy as jnp
from jax import lax
from jax.experimental import pallas as pl
from jax.experimental.pallas import tpu as pltpu


_MXU_DTYPE = jnp.bfloat16

_TM, _TN, _TK = 512, 512, 512     # GEMM tiles (bf16 staging)
_FUSE_LN_MAX_K = 2048             # fuse LN into GEMM when K fits one tile
_TQ, _TKV = 256, 128              # flash-attention tiles
_LN_ROWS = 256                    # standalone LayerNorm row tile (v7x-safe)
_VMEM_LIMIT = 48 * 1024 * 1024

_NEG_INF = -0.7 * float(jnp.finfo(jnp.float32).max)


def _cparams(*semantics):
    return pltpu.CompilerParams(dimension_semantics=semantics,
                                vmem_limit_bytes=_VMEM_LIMIT)


def _round_up(x, m):
    return ((x + m - 1) // m) * m


def _tile_and_pad(dim, preferred):
    """(tile, padded_dim): full-dim single tile when small (exempt from the
    (8,128) divisibility rule), else `preferred` tiles over a padded dim."""
    if dim <= preferred:
        return dim, dim
    return preferred, _round_up(dim, preferred)


# ---------------------------------------------------------------------------
# Linear: 3-D tiled GEMM, f32 accumulator, fused LN / bias / activation / residual
# ---------------------------------------------------------------------------

def _linear_kernel(*refs, activation, has_residual, fuse_ln, ln_eps):
    it = iter(refs)
    x_ref = next(it)
    w_ref = next(it)
    b_ref = next(it)
    g_ref = next(it) if fuse_ln else None
    be_ref = next(it) if fuse_ln else None
    res_ref = next(it) if has_residual else None
    o_ref = next(it)
    acc_ref = next(it)

    k = pl.program_id(2)

    @pl.when(k == 0)
    def _():
        acc_ref[...] = jnp.zeros_like(acc_ref)

    x = x_ref[...]
    if fuse_ln:
        # LN fused: requires the full K row in this block (single K tile).
        xf = x.astype(jnp.float32)
        mean = jnp.mean(xf, axis=-1, keepdims=True)
        xc = xf - mean
        var = jnp.mean(xc * xc, axis=-1, keepdims=True)
        xf = xc * lax.rsqrt(var + ln_eps)
        xf = xf * g_ref[...].astype(jnp.float32) + be_ref[...].astype(jnp.float32)
        x = xf.astype(_MXU_DTYPE)
    else:
        x = x.astype(_MXU_DTYPE)

    acc_ref[...] += jnp.dot(x, w_ref[...].astype(_MXU_DTYPE),
                            preferred_element_type=jnp.float32)

    @pl.when(k == pl.num_programs(2) - 1)
    def _():
        acc = acc_ref[...] + b_ref[...].astype(jnp.float32)
        if activation == "relu":
            acc = jnp.maximum(acc, 0.0)
        elif activation == "gelu":
            acc = jax.nn.gelu(acc)     # tanh approximation == GPT-2 gelu_new
        if has_residual:
            acc = acc + res_ref[...].astype(jnp.float32)
        o_ref[...] = acc.astype(o_ref.dtype)


def linear(x, w, b, activation=None, residual=None, fused_ln=None,
           out_dtype=None, ln_eps=1e-5):
    """x: [M,K] (bf16), w: [K,N] (bf16), b: [N] (f32) -> [M,N].
    fused_ln=(gamma, beta) applies LayerNorm to x inside the kernel."""
    M, K = x.shape
    N = w.shape[1]
    out_dtype = out_dtype or x.dtype
    fuse_ln = fused_ln is not None
    if fuse_ln:
        assert K <= _FUSE_LN_MAX_K, "LN fusion needs K in a single tile"
        tk, Kp = K, K
    else:
        tk, Kp = _tile_and_pad(K, _TK)
    tm, Mp = _tile_and_pad(M, _TM)
    tn, Np = _tile_and_pad(N, _TN)

    xp = x if (Mp == M and Kp == K) else jnp.pad(x, ((0, Mp - M), (0, Kp - K)))
    wp = w if (Kp == K and Np == N) else jnp.pad(w, ((0, Kp - K), (0, Np - N)))
    bp = b.reshape(1, N)
    if Np != N:
        bp = jnp.pad(bp, ((0, 0), (0, Np - N)))

    in_specs = [
        pl.BlockSpec((tm, tk), lambda i, j, k: (i, k)),
        pl.BlockSpec((tk, tn), lambda i, j, k: (k, j)),
        pl.BlockSpec((1, tn), lambda i, j, k: (0, j)),
    ]
    inputs = [xp, wp, bp]
    if fuse_ln:
        g, be = fused_ln
        in_specs += [pl.BlockSpec((1, Kp), lambda i, j, k: (0, 0)),
                     pl.BlockSpec((1, Kp), lambda i, j, k: (0, 0))]
        inputs += [g.reshape(1, K), be.reshape(1, K)]
    has_residual = residual is not None
    if has_residual:
        rp = residual
        if Mp != M or Np != N:
            rp = jnp.pad(rp, ((0, Mp - M), (0, Np - N)))
        in_specs.append(pl.BlockSpec((tm, tn), lambda i, j, k: (i, j)))
        inputs.append(rp)

    cost = pl.CostEstimate(
        flops=2 * Mp * Kp * Np,
        transcendentals=(Mp * Np if activation == "gelu" else 0),
        bytes_accessed=2 * (Mp * Kp + Kp * Np + Mp * Np
                            + (Mp * Np if has_residual else 0)),
    )

    out = pl.pallas_call(
        functools.partial(_linear_kernel, activation=activation,
                          has_residual=has_residual, fuse_ln=fuse_ln,
                          ln_eps=ln_eps),
        out_shape=jax.ShapeDtypeStruct((Mp, Np), out_dtype),
        grid=(Mp // tm, Np // tn, Kp // tk),
        in_specs=in_specs,
        out_specs=pl.BlockSpec((tm, tn), lambda i, j, k: (i, j)),
        scratch_shapes=[pltpu.VMEM((tm, tn), jnp.float32)],
        compiler_params=_cparams("parallel", "parallel", "arbitrary"),
        cost_estimate=cost,
    )(*inputs)

    if Mp != M or Np != N:
        out = out[:M, :N]
    return out


# ---------------------------------------------------------------------------
# Standalone LayerNorm (final LN / large-H fallback): row-tiled, bf16 output
# ---------------------------------------------------------------------------

def _layernorm_kernel(x_ref, g_ref, b_ref, o_ref, *, eps):
    x = x_ref[...].astype(jnp.float32)
    mean = jnp.mean(x, axis=-1, keepdims=True)
    xc = x - mean
    var = jnp.mean(xc * xc, axis=-1, keepdims=True)
    y = xc * lax.rsqrt(var + eps)
    o_ref[...] = (y * g_ref[...].astype(jnp.float32)
                  + b_ref[...].astype(jnp.float32)).astype(o_ref.dtype)


def layernorm(x, g, b, eps=1e-5, out_dtype=None):
    M, H = x.shape
    out_dtype = out_dtype or x.dtype
    tm, Mp = _tile_and_pad(M, _LN_ROWS)
    xp = x if Mp == M else jnp.pad(x, ((0, Mp - M), (0, 0)))
    out = pl.pallas_call(
        functools.partial(_layernorm_kernel, eps=eps),
        out_shape=jax.ShapeDtypeStruct((Mp, H), out_dtype),
        grid=(Mp // tm,),
        in_specs=[pl.BlockSpec((tm, H), lambda i: (i, 0)),
                  pl.BlockSpec((1, H), lambda i: (0, 0)),
                  pl.BlockSpec((1, H), lambda i: (0, 0))],
        out_specs=pl.BlockSpec((tm, H), lambda i: (i, 0)),
        compiler_params=_cparams("parallel"),
    )(xp, g.reshape(1, H), b.reshape(1, H))
    return out[:M] if Mp != M else out


# ---------------------------------------------------------------------------
# Flash-style causal attention on [B, T, H] (heads looped inside the kernel)
# ---------------------------------------------------------------------------

def _flash_attn_kernel(q_ref, k_ref, v_ref, o_ref, m_sc, l_sc, acc_sc,
                       *, scale, tq, tkv, n_heads, dh):
    qi = pl.program_id(1)
    ki = pl.program_id(2)

    @pl.when(ki == 0)
    def _():
        m_sc[...] = jnp.full_like(m_sc, _NEG_INF)
        l_sc[...] = jnp.zeros_like(l_sc)
        acc_sc[...] = jnp.zeros_like(acc_sc)

    # Only tiles at or below the causal diagonal contribute.
    @pl.when(ki * tkv <= qi * tq + (tq - 1))
    def _():
        q = q_ref[0]           # [tq, H]  bf16
        k = k_ref[0]           # [tkv, H] bf16
        v = v_ref[0]           # [tkv, H] bf16
        row = qi * tq + lax.broadcasted_iota(jnp.int32, (tq, tkv), 0)
        col = ki * tkv + lax.broadcasted_iota(jnp.int32, (tq, tkv), 1)
        causal = col <= row

        m_prev = m_sc[...]     # [tq, nH] f32
        l_prev = l_sc[...]
        acc_prev = acc_sc[...]  # [tq, H] f32
        new_m, new_l, new_acc = [], [], []
        for h in range(n_heads):
            sl = slice(h * dh, (h + 1) * dh)
            q_h = q[:, sl] * scale                             # [tq, dh] bf16
            s = lax.dot_general(q_h, k[:, sl], (((1,), (1,)), ((), ())),
                                preferred_element_type=jnp.float32)
            s = jnp.where(causal, s, _NEG_INF)
            m_p = m_prev[:, h:h + 1]
            m_n = jnp.maximum(m_p, jnp.max(s, axis=-1, keepdims=True))
            alpha = jnp.exp(m_p - m_n)
            p = jnp.exp(s - m_n)
            new_l.append(alpha * l_prev[:, h:h + 1]
                         + jnp.sum(p, axis=-1, keepdims=True))
            pv = lax.dot_general(p.astype(v.dtype), v[:, sl],
                                 (((1,), (0,)), ((), ())),
                                 preferred_element_type=jnp.float32)
            new_acc.append(alpha * acc_prev[:, sl] + pv)
            new_m.append(m_n)
        m_sc[...] = jnp.concatenate(new_m, axis=-1)
        l_sc[...] = jnp.concatenate(new_l, axis=-1)
        acc_sc[...] = jnp.concatenate(new_acc, axis=-1)

    @pl.when(ki == pl.num_programs(2) - 1)
    def _():
        l_all = l_sc[...]
        acc_all = acc_sc[...]
        outs = []
        for h in range(n_heads):
            inv_l = pl.reciprocal(l_all[:, h:h + 1], approx=True)
            outs.append(acc_all[:, h * dh:(h + 1) * dh] * inv_l)
        o_ref[0, :, :] = jnp.concatenate(outs, axis=-1).astype(o_ref.dtype)


def causal_attention(q, k, v, *, n_heads):
    """q/k/v: [B, T, H] (bf16) -> [B, T, H]; per-head softmax(QK^T/sqrt(dh)+causal)V."""
    B, T, H = q.shape
    assert H % n_heads == 0
    dh = H // n_heads
    scale = 1.0 / (dh ** 0.5)

    if T <= _TQ:
        tq = tkv = Tp = T
    else:
        tq, tkv = _TQ, _TKV
        Tp = _round_up(T, _TQ)
    if Tp != T:
        pad = ((0, 0), (0, Tp - T), (0, 0))   # padded keys sit above the causal
        q, k, v = jnp.pad(q, pad), jnp.pad(k, pad), jnp.pad(v, pad)  # diag -> masked

    q_spec = pl.BlockSpec((1, tq, H), lambda b, qi, ki: (b, qi, 0))

    def kv_index(b, qi, ki):
        # Clamp to the causal boundary: fully-masked tiles map to the previous
        # block index, so Pallas skips their KV DMA entirely.
        return (b, jnp.minimum(ki, (qi * tq + tq - 1) // tkv), 0)

    kv_spec = pl.BlockSpec((1, tkv, H), kv_index)

    cost = pl.CostEstimate(
        flops=2 * B * Tp * Tp * H,                  # ~causal-halved QK^T + PV
        transcendentals=B * n_heads * Tp * Tp // 2,
        bytes_accessed=2 * B * Tp * H * (4 + 2 * (Tp // tq)),
    )
    out = pl.pallas_call(
        functools.partial(_flash_attn_kernel, scale=scale, tq=tq, tkv=tkv,
                          n_heads=n_heads, dh=dh),
        out_shape=jax.ShapeDtypeStruct((B, Tp, H), q.dtype),
        grid=(B, Tp // tq, Tp // tkv),
        in_specs=[q_spec, kv_spec, kv_spec],
        out_specs=q_spec,
        scratch_shapes=[
            pltpu.VMEM((tq, n_heads), jnp.float32),   # running max m (per head)
            pltpu.VMEM((tq, n_heads), jnp.float32),   # running denom l
            pltpu.VMEM((tq, H), jnp.float32),         # running numerator
        ],
        compiler_params=_cparams("parallel", "parallel", "arbitrary"),
        cost_estimate=cost,
    )(q, k, v)
    return out[:, :T, :] if Tp != T else out


# ---------------------------------------------------------------------------
# Fused value head: Linear(H,2H) -> ReLU -> Linear(2H,1), 2H tiled as reduction
# ---------------------------------------------------------------------------

def _value_head_kernel(x_ref, w1_ref, b1_ref, w2_ref, b2_ref, o_ref, acc_ref):
    j = pl.program_id(1)

    @pl.when(j == 0)
    def _():
        acc_ref[...] = jnp.zeros_like(acc_ref)

    h = jnp.dot(x_ref[...].astype(_MXU_DTYPE), w1_ref[...].astype(_MXU_DTYPE),
                preferred_element_type=jnp.float32)
    h = jnp.maximum(h + b1_ref[...].astype(jnp.float32), 0.0)
    acc_ref[...] += jnp.dot(h.astype(_MXU_DTYPE), w2_ref[...].astype(_MXU_DTYPE),
                            preferred_element_type=jnp.float32)

    @pl.when(j == pl.num_programs(1) - 1)
    def _():
        o_ref[...] = (acc_ref[...] + b2_ref[...].astype(jnp.float32)
                      ).astype(o_ref.dtype)


def value_head(x, w1, b1, w2, b2):
    """x: [M,H] -> [M,1] f32; the [tm, 2H] intermediate never leaves VMEM and
    the (H,2H) weight is streamed in (H, tn) tiles (VMEM O(tm*tn))."""
    M, H = x.shape
    H2 = w1.shape[1]
    tm, Mp = _tile_and_pad(M, _TM)
    tn, H2p = _tile_and_pad(H2, _TN)
    xp = x if Mp == M else jnp.pad(x, ((0, Mp - M), (0, 0)))
    w1p = w1 if H2p == H2 else jnp.pad(w1, ((0, 0), (0, H2p - H2)))
    b1p = b1.reshape(1, H2)
    if H2p != H2:
        b1p = jnp.pad(b1p, ((0, 0), (0, H2p - H2)))
    w2p = w2 if H2p == H2 else jnp.pad(w2, ((0, H2p - H2), (0, 0)))

    out = pl.pallas_call(
        _value_head_kernel,
        out_shape=jax.ShapeDtypeStruct((Mp, 1), jnp.float32),
        grid=(Mp // tm, H2p // tn),
        in_specs=[
            pl.BlockSpec((tm, H), lambda i, j: (i, 0)),
            pl.BlockSpec((H, tn), lambda i, j: (0, j)),
            pl.BlockSpec((1, tn), lambda i, j: (0, j)),
            pl.BlockSpec((tn, 1), lambda i, j: (j, 0)),
            pl.BlockSpec((1, 1), lambda i, j: (0, 0)),
        ],
        out_specs=pl.BlockSpec((tm, 1), lambda i, j: (i, 0)),
        scratch_shapes=[pltpu.VMEM((tm, 1), jnp.float32)],
        compiler_params=_cparams("parallel", "arbitrary"),
    )(xp, w1p, b1p, w2p, b2.reshape(1, 1))
    return out[:M]


# ---------------------------------------------------------------------------
# Parameters: deterministic synthetic init (f32) + one-time bf16/pad staging
# ---------------------------------------------------------------------------

def init_params(key, *, vocab, max_pos, hidden, n_layers, n_heads):
    def normal(key, shape, scale=0.02):
        return (scale * jax.random.normal(key, shape)).astype(jnp.float32)

    keys = iter(jax.random.split(key, 8 + 8 * n_layers))
    params = {
        "wte": normal(next(keys), (vocab, hidden)),
        "wpe": normal(next(keys), (max_pos, hidden)),
        "lnf_g": jnp.ones((hidden,), jnp.float32),
        "lnf_b": jnp.zeros((hidden,), jnp.float32),
        "w_lm": normal(next(keys), (hidden, vocab)),      # GPT-2 lm_head: no bias
        "b_lm": jnp.zeros((vocab,), jnp.float32),
        "vh_w1": normal(next(keys), (hidden, 2 * hidden)),
        "vh_b1": jnp.zeros((2 * hidden,), jnp.float32),
        "vh_w2": normal(next(keys), (2 * hidden, 1)),
        "vh_b2": jnp.zeros((1,), jnp.float32),
        "layers": [],
    }
    for _ in range(n_layers):
        params["layers"].append({
            "ln1_g": jnp.ones((hidden,), jnp.float32),
            "ln1_b": jnp.zeros((hidden,), jnp.float32),
            "w_qkv": normal(next(keys), (hidden, 3 * hidden)),
            "b_qkv": jnp.zeros((3 * hidden,), jnp.float32),
            "w_o": normal(next(keys), (hidden, hidden)),
            "b_o": jnp.zeros((hidden,), jnp.float32),
            "ln2_g": jnp.ones((hidden,), jnp.float32),
            "ln2_b": jnp.zeros((hidden,), jnp.float32),
            "w_fc": normal(next(keys), (hidden, 4 * hidden)),
            "b_fc": jnp.zeros((4 * hidden,), jnp.float32),
            "w_proj": normal(next(keys), (4 * hidden, hidden)),
            "b_proj": jnp.zeros((hidden,), jnp.float32),
        })
    return params


def prepare_params(params):
    """One-time staging: cast GEMM operands to bf16 and pre-pad the lm_head
    weight/bias to the GEMM tile, so no per-forward pad / cast of weights."""
    bf = lambda a: a.astype(_MXU_DTYPE)
    vocab = params["w_lm"].shape[1]
    _, vp = _tile_and_pad(vocab, _TN)
    w_lm, b_lm = bf(params["w_lm"]), params["b_lm"]
    if vp != vocab:
        w_lm = jnp.pad(w_lm, ((0, 0), (0, vp - vocab)))
        b_lm = jnp.pad(b_lm, ((0, vp - vocab),))
    p = {
        "wte": bf(params["wte"]), "wpe": bf(params["wpe"]),
        "lnf_g": params["lnf_g"], "lnf_b": params["lnf_b"],
        "w_lm": w_lm, "b_lm": b_lm, "vocab": vocab,
        "vh_w1": bf(params["vh_w1"]), "vh_b1": params["vh_b1"],
        "vh_w2": bf(params["vh_w2"]), "vh_b2": params["vh_b2"],
        "layers": [],
    }
    for layer in params["layers"]:
        p["layers"].append({
            "ln1_g": layer["ln1_g"], "ln1_b": layer["ln1_b"],
            "w_qkv": bf(layer["w_qkv"]), "b_qkv": layer["b_qkv"],
            "w_o": bf(layer["w_o"]), "b_o": layer["b_o"],
            "ln2_g": layer["ln2_g"], "ln2_b": layer["ln2_b"],
            "w_fc": bf(layer["w_fc"]), "b_fc": layer["b_fc"],
            "w_proj": bf(layer["w_proj"]), "b_proj": layer["b_proj"],
        })
    return p


# ---------------------------------------------------------------------------
# Forward (mirrors CausalLMWithValueHead.forward, return_dict=False)
# ---------------------------------------------------------------------------

def causal_lm_with_value_head_forward(params, input_ids, *, n_heads,
                                      logits_dtype=jnp.bfloat16):
    B, T = input_ids.shape
    H = params["wte"].shape[1]
    M = B * T

    # embeddings (gather is XLA glue); residual stream stays bf16 in HBM
    h = jnp.take(params["wte"], input_ids, axis=0) + params["wpe"][:T][None, :, :]
    x2 = h.reshape(M, H)
    fuse_ln = H <= _FUSE_LN_MAX_K

    for layer in params["layers"]:
        # --- attention sub-block (pre-LN); LN fused into the qkv GEMM ---
        if fuse_ln:
            qkv = linear(x2, layer["w_qkv"], layer["b_qkv"],
                         fused_ln=(layer["ln1_g"], layer["ln1_b"]))
        else:
            a_in = layernorm(x2, layer["ln1_g"], layer["ln1_b"])
            qkv = linear(a_in, layer["w_qkv"], layer["b_qkv"])
        q = qkv[:, :H].reshape(B, T, H)
        k = qkv[:, H:2 * H].reshape(B, T, H)
        v = qkv[:, 2 * H:].reshape(B, T, H)
        attn = causal_attention(q, k, v, n_heads=n_heads).reshape(M, H)
        # output projection with residual add fused into the kernel epilogue
        x2 = linear(attn, layer["w_o"], layer["b_o"], residual=x2)

        # --- MLP sub-block (pre-LN); LN fused into the fc GEMM ---
        if fuse_ln:
            m = linear(x2, layer["w_fc"], layer["b_fc"], activation="gelu",
                       fused_ln=(layer["ln2_g"], layer["ln2_b"]))
        else:
            m_in = layernorm(x2, layer["ln2_g"], layer["ln2_b"])
            m = linear(m_in, layer["w_fc"], layer["b_fc"], activation="gelu")
        x2 = linear(m, layer["w_proj"], layer["b_proj"], residual=x2)

    # final LN -> last_hidden_state (needed by both lm_head and v_head)
    last_hidden = layernorm(x2, params["lnf_g"], params["lnf_b"])

    # lm_head (weight pre-padded at init; logits emitted in bf16 by default)
    vocab = params.get("vocab", params["w_lm"].shape[1])
    lm_logits = linear(last_hidden, params["w_lm"], params["b_lm"],
                       out_dtype=logits_dtype)
    lm_logits = lm_logits[:, :vocab].reshape(B, T, vocab)

    # v_head: fused Linear -> ReLU -> Linear, then squeeze(-1)
    value = value_head(last_hidden, params["vh_w1"], params["vh_b1"],
                       params["vh_w2"], params["vh_b2"])
    value = value.reshape(B, T)

    # return_dict=False path: (lm_logits,) + transformer_outputs[1:] + (value,)
    return (lm_logits, value)


# ---------------------------------------------------------------------------
# Demo
# ---------------------------------------------------------------------------

if __name__ == "__main__":
    VOCAB, MAX_POS, HIDDEN, N_LAYERS, N_HEADS = 256, 16, 32, 2, 2
    B, T = 2, 8

    key = jax.random.PRNGKey(0)
    k_params, k_ids = jax.random.split(key)
    raw_params = init_params(k_params, vocab=VOCAB, max_pos=MAX_POS,
                             hidden=HIDDEN, n_layers=N_LAYERS, n_heads=N_HEADS)
    params = prepare_params(raw_params)      # one-time bf16 cast + lm_head pad
    input_ids = jax.random.randint(k_ids, (B, T), 0, VOCAB, dtype=jnp.int32)

    lm_logits, value = causal_lm_with_value_head_forward(
        params, input_ids, n_heads=N_HEADS)
    jax.block_until_ready((lm_logits, value))

    # TODO(synk): outputs use bf16 MXU staging + approx reciprocal, so they match
    # a PyTorch f32 reference only to mixed-precision tolerance, not bitwise.
    assert lm_logits.shape == (B, T, VOCAB) and lm_logits.dtype == jnp.bfloat16
    assert value.shape == (B, T) and value.dtype == jnp.float32
    assert bool(jnp.all(jnp.isfinite(lm_logits.astype(jnp.float32))))
    assert bool(jnp.all(jnp.isfinite(value)))
    print("KERNEL_OK")
</pallas_src>

<mosaic_0001>
module attributes {stable_mosaic.version = 11 : i64} {
  func.func @_linear_kernel(%arg0: i32, %arg1: i32, %arg2: i32, %arg3: memref<16x32xbf16, #tpu.memory_space<vmem>>, %arg4: memref<32x96xbf16, #tpu.memory_space<vmem>>, %arg5: memref<1x96xf32, #tpu.memory_space<vmem>>, %arg6: memref<1x32xf32, #tpu.memory_space<vmem>>, %arg7: memref<1x32xf32, #tpu.memory_space<vmem>>, %arg8: memref<16x96xbf16, #tpu.memory_space<vmem>>, %arg9: memref<16x96xf32, #tpu.memory_space<vmem>>) attributes {dimension_semantics = [#tpu.dimension_semantics<parallel>, #tpu.dimension_semantics<parallel>, #tpu.dimension_semantics<arbitrary>], iteration_bounds = array<i64: 1, 1, 1>, scalar_prefetch = 0 : i64, scratch_operands = 1 : i64, tpu.core_type = #tpu.core_type<tc>, window_params = [{transform_indices = @transform_0, window_bounds = array<i64: 16, 32>}, {transform_indices = @transform_1, window_bounds = array<i64: 32, 96>}, {transform_indices = @transform_2, window_bounds = array<i64: 1, 96>}, {pipeline_mode = #tpu.pipeline_mode<synchronous>, transform_indices = @transform_3, window_bounds = array<i64: 1, 32>}, {pipeline_mode = #tpu.pipeline_mode<synchronous>, transform_indices = @transform_4, window_bounds = array<i64: 1, 32>}, {transform_indices = @transform_5, window_bounds = array<i64: 16, 96>}]} {
    %c0_i32 = arith.constant 0 : i32
    %0 = arith.cmpi eq, %arg2, %c0_i32 : i32
    %1 = arith.extui %0 : i1 to i32
    %c0_i32_0 = arith.constant 0 : i32
    %2 = arith.cmpi ne, %1, %c0_i32_0 : i32
    scf.if %2 {
      %cst_19 = arith.constant 0.000000e+00 : f32
      %36 = vector.broadcast %cst_19 : f32 to vector<16x96xf32>
      %c0_20 = arith.constant 0 : index
      %c0_21 = arith.constant 0 : index
      %37 = vector.load %arg9[%c0_20, %c0_21] : memref<16x96xf32, #tpu.memory_space<vmem>>, vector<16x96xf32>
      tpu.vector_store %arg9[%c0_20, %c0_21], %36 {strides = array<i32>} : memref<16x96xf32, #tpu.memory_space<vmem>>, vector<16x96xf32>,
    } else {
    }
    %c0 = arith.constant 0 : index
    %c0_1 = arith.constant 0 : index
    %3 = vector.load %arg3[%c0, %c0_1] : memref<16x32xbf16, #tpu.memory_space<vmem>>, vector<16x32xbf16>
    %4 = arith.extf %3 : vector<16x32xbf16> to vector<16x32xf32>
    %cst = arith.constant dense<0.000000e+00> : vector<16xf32>
    %5 = vector.multi_reduction <add>, %4, %cst [1] : vector<16x32xf32> to vector<16xf32>
    %6 = vector.shape_cast %5 : vector<16xf32> to vector<16x1xf32>
    %cst_2 = arith.constant 3.200000e+01 : f32
    %7 = vector.broadcast %cst_2 : f32 to vector<16x1xf32>
    %8 = arith.divf %6, %7 : vector<16x1xf32>
    %9 = vector.broadcast %8 : vector<16x1xf32> to vector<16x32xf32>
    %10 = arith.subf %4, %9 : vector<16x32xf32>
    %11 = arith.mulf %10, %10 : vector<16x32xf32>
    %cst_3 = arith.constant dense<0.000000e+00> : vector<16xf32>
    %12 = vector.multi_reduction <add>, %11, %cst_3 [1] : vector<16x32xf32> to vector<16xf32>
    %13 = vector.shape_cast %12 : vector<16xf32> to vector<16x1xf32>
    %cst_4 = arith.constant 3.200000e+01 : f32
    %14 = vector.broadcast %cst_4 : f32 to vector<16x1xf32>
    %15 = arith.divf %13, %14 : vector<16x1xf32>
    %cst_5 = arith.constant 9.99999974E-6 : f32
    %16 = vector.broadcast %cst_5 : f32 to vector<16x1xf32>
    %17 = arith.addf %15, %16 : vector<16x1xf32>
    %18 = math.rsqrt %17 : vector<16x1xf32>
    %19 = vector.broadcast %18 : vector<16x1xf32> to vector<16x32xf32>
    %20 = arith.mulf %10, %19 : vector<16x32xf32>
    %c0_6 = arith.constant 0 : index
    %c0_7 = arith.constant 0 : index
    %21 = vector.load %arg6[%c0_6, %c0_7] : memref<1x32xf32, #tpu.memory_space<vmem>>, vector<1x32xf32>
    %22 = vector.broadcast %21 : vector<1x32xf32> to vector<16x32xf32>
    %23 = arith.mulf %20, %22 : vector<16x32xf32>
    %c0_8 = arith.constant 0 : index
    %c0_9 = arith.constant 0 : index
    %24 = vector.load %arg7[%c0_8, %c0_9] : memref<1x32xf32, #tpu.memory_space<vmem>>, vector<1x32xf32>
    %25 = vector.broadcast %24 : vector<1x32xf32> to vector<16x32xf32>
    %26 = arith.addf %23, %25 : vector<16x32xf32>
    %27 = arith.truncf %26 : vector<16x32xf32> to vector<16x32xbf16>
    %c0_10 = arith.constant 0 : index
    %c0_11 = arith.constant 0 : index
    %28 = vector.load %arg9[%c0_10, %c0_11] : memref<16x96xf32, #tpu.memory_space<vmem>>, vector<16x96xf32>
    %c0_12 = arith.constant 0 : index
    %c0_13 = arith.constant 0 : index
    %29 = vector.load %arg4[%c0_12, %c0_13] : memref<32x96xbf16, #tpu.memory_space<vmem>>, vector<32x96xbf16>
    %cst_14 = arith.constant dense<0.000000e+00> : vector<16x96xf32>
    %30 = tpu.matmul %27, %29, %cst_14 {dimension_numbers = #tpu.dot_dimension_numbers<[1], [0], [0], [1], [0, 0, 1, 1], [], []>} : vector<16x32xbf16>, vector<32x96xbf16>, vector<16x96xf32> -> vector<16x96xf32>
    %31 = arith.addf %28, %30 : vector<16x96xf32>
    %c0_15 = arith.constant 0 : index
    %c0_16 = arith.constant 0 : index
    %32 = vector.load %arg9[%c0_15, %c0_16] : memref<16x96xf32, #tpu.memory_space<vmem>>, vector<16x96xf32>
    tpu.vector_store %arg9[%c0_15, %c0_16], %31 {strides = array<i32>} : memref<16x96xf32, #tpu.memory_space<vmem>>, vector<16x96xf32>,
    %c0_i32_17 = arith.constant 0 : i32
    %33 = arith.cmpi eq, %arg2, %c0_i32_17 : i32
    %34 = arith.extui %33 : i1 to i32
    %c0_i32_18 = arith.constant 0 : i32
    %35 = arith.cmpi ne, %34, %c0_i32_18 : i32
    scf.if %35 {
      %c0_19 = arith.constant 0 : index
      %c0_20 = arith.constant 0 : index
      %36 = vector.load %arg9[%c0_19, %c0_20] : memref<16x96xf32, #tpu.memory_space<vmem>>, vector<16x96xf32>
      %c0_21 = arith.constant 0 : index
      %c0_22 = arith.constant 0 : index
      %37 = vector.load %arg5[%c0_21, %c0_22] : memref<1x96xf32, #tpu.memory_space<vmem>>, vector<1x96xf32>
      %38 = vector.broadcast %37 : vector<1x96xf32> to vector<16x96xf32>
      %39 = arith.addf %36, %38 : vector<16x96xf32>
      %40 = arith.truncf %39 : vector<16x96xf32> to vector<16x96xbf16>
      %c0_23 = arith.constant 0 : index
      %c0_24 = arith.constant 0 : index
      %41 = vector.load %arg8[%c0_23, %c0_24] : memref<16x96xbf16, #tpu.memory_space<vmem>>, vector<16x96xbf16>
      tpu.vector_store %arg8[%c0_23, %c0_24], %40 {strides = array<i32>} : memref<16x96xbf16, #tpu.memory_space<vmem>>, vector<16x96xbf16>,
    } else {
    }
    return
  }
  func.func @transform_0(%arg0: i32, %arg1: i32, %arg2: i32) -> (i32, i32) {
    %c0_i32 = arith.constant 0 : i32
    return %arg0, %arg2 : i32, i32
  }
  func.func @transform_1(%arg0: i32, %arg1: i32, %arg2: i32) -> (i32, i32) {
    %c0_i32 = arith.constant 0 : i32
    return %arg2, %arg1 : i32, i32
  }
  func.func @transform_2(%arg0: i32, %arg1: i32, %arg2: i32) -> (i32, i32) {
    %c0_i32 = arith.constant 0 : i32
    %c0_i32_0 = arith.constant 0 : i32
    return %c0_i32, %arg1 : i32, i32
  }
  func.func @transform_3(%arg0: i32, %arg1: i32, %arg2: i32) -> (i32, i32) {
    %c0_i32 = arith.constant 0 : i32
    %c0_i32_0 = arith.constant 0 : i32
    %c0_i32_1 = arith.constant 0 : i32
    return %c0_i32, %c0_i32_0 : i32, i32
  }
  func.func @transform_4(%arg0: i32, %arg1: i32, %arg2: i32) -> (i32, i32) {
    %c0_i32 = arith.constant 0 : i32
    %c0_i32_0 = arith.constant 0 : i32
    %c0_i32_1 = arith.constant 0 : i32
    return %c0_i32, %c0_i32_0 : i32, i32
  }
  func.func @transform_5(%arg0: i32, %arg1: i32, %arg2: i32) -> (i32, i32) {
    %c0_i32 = arith.constant 0 : i32
    return %arg0, %arg1 : i32, i32
  }
}

</mosaic_0001>

<llo_original>
// kernel: tpu_custom_call.1
$region0: #{tpu_custom_call.1}
  #allocation0 [shape = 'u32[]', space=smem, size = 0x4, offset = 0x4, fixed_abs, tag = 'smem constant byte address 0x4 - core index']
  #allocation1 [shape = 'u32[144,128]{1,0:T(1,128)}', space=vmem, size = 0x12000, scoped, tag = 'internal scratch']
  #allocation2 [shape = 'f32[16,96]{1,0:T(8,128)}', space=vmem, size = 0x2000, scoped, tag = 'scratch operand']
  %s0 = inlined_call_operand.hbm [shape: bf16[16,32], index: 0, kind: input, shape index: {}]
  %s1 = inlined_call_operand.hbm [shape: bf16[32,96], index: 1, kind: input, shape index: {}]
  %s2 = inlined_call_operand.vmem [shape: f32[1,96], index: 2, kind: input, shape index: {}]
  %s3 = inlined_call_operand.vmem [shape: f32[1,32], index: 3, kind: input, shape index: {}]
  %s4 = inlined_call_operand.vmem [shape: f32[1,32], index: 4, kind: input, shape index: {}]
  %s5 = inlined_call_operand.hbm [shape: bf16[16,96], index: 5, kind: output, shape index: {}]
  %s6 = sld [smem:[#allocation0]]
  $region46: #{tpu_custom_call.1} parent=0
    _
  %s8 = ssub.s32 1, %s6
  %s9 = scalar_select 0, %s8, %s6
  $region1: #{tpu_custom_call.1} parent=0
    #allocation3 [shape = 'u8[4096]{0}', space=vmem, size = 0x1000, scoped, tag = 'input window, operand 0, single buffered']
    #allocation4 [shape = 's32[1]{0}', space=sflag, size = 0x4, scoped, tag = 'scoped memory for tpu_custom_call.1']
    #allocation5 [shape = 's32[1]{0}', space=sflag, size = 0x4, scoped, tag = 'scoped memory for tpu_custom_call.1']
    #allocation6 [shape = 'u8[8192]{0}', space=vmem, size = 0x2000, scoped, tag = 'input window, operand 1, single buffered']
    #allocation7 [shape = 's32[1]{0}', space=sflag, size = 0x4, scoped, tag = 'scoped memory for tpu_custom_call.1']
    #allocation8 [shape = 'u8[4096]{0}', space=vmem, size = 0x1000, scoped, tag = 'output window, operand 0, single buffered']
    %10 = vsyncpa [#allocation4], 0
    %11 = vsyncpa [#allocation7], 0
    %12 = vsyncpa [#allocation5], 0
    // Predicated region
    $region2: #{tpu_custom_call.1} parent=1 // pred_check
      _
    $region3: #{tpu_custom_call.1} parent=1 // pred_check_branch
      %14 = sbr.rel (0) target = $region5
    $region4: #{tpu_custom_call.1} parent=1 // pred_region
      %s16 = ssub.s32 128, 128
      %17 = vsyncadd [#allocation4], %s16
      %s18 = sshll.u32 [#allocation3], 4
      %s19 = int_to_ptr.vmem [resolvable:$true] %s18
      %24 = dma.hbm_to_vmem [thread:$0]  %s0, 128, %s19, [#allocation4], 64, 64, 4
    $region5: #{tpu_custom_call.1} parent=1 // pred_fallthru
      _
    // Predicated region
    $region6: #{tpu_custom_call.1} parent=1 // pred_check
      _
    $region7: #{tpu_custom_call.1} parent=1 // pred_check_branch
      %26 = sbr.rel (0) target = $region9
    $region8: #{tpu_custom_call.1} parent=1 // pred_region
      %s28 = ssub.s32 256, 256
      %29 = vsyncadd [#allocation7], %s28
      %s30 = sshll.u32 [#allocation6], 4
      %s31 = int_to_ptr.vmem [resolvable:$true] %s30
      %36 = dma.hbm_to_vmem [thread:$0]  %s1, 256, %s31, [#allocation7], 64, 64, 4
    $region9: #{tpu_custom_call.1} parent=1 // pred_fallthru
      _
    // Predicated region
    $region10: #{tpu_custom_call.1} parent=1 // pred_check
      _
    $region11: #{tpu_custom_call.1} parent=1 // pred_check_branch
      %38 = sbr.rel (0) target = $region13
    $region12: #{tpu_custom_call.1} parent=1 // pred_region
      _
    $region13: #{tpu_custom_call.1} parent=1 // pred_fallthru
      _
    // Predicated region
    $region14: #{tpu_custom_call.1} parent=1 // pred_check
      _
    $region15: #{tpu_custom_call.1} parent=1 // pred_check_branch
      %40 = sbr.rel (0) target = $region17
    $region16: #{tpu_custom_call.1} parent=1 // pred_region
      _
    $region17: #{tpu_custom_call.1} parent=1 // pred_fallthru
      _
    // Predicated region
    $region18: #{tpu_custom_call.1} parent=1 // pred_check
      _
    $region19: #{tpu_custom_call.1} parent=1 // pred_check_branch
      %42 = sbr.rel (0) target = $region21
    $region20: #{tpu_custom_call.1} parent=1 // pred_region
      _
    $region21: #{tpu_custom_call.1} parent=1 // pred_fallthru
      _
    // Predicated region
    $region22: #{tpu_custom_call.1} parent=1 // pred_check
      _
    $region23: #{tpu_custom_call.1} parent=1 // pred_check_branch
      %44 = sbr.rel (0) target = $region25
    $region24: #{tpu_custom_call.1} parent=1 // pred_region
      %45 = dma.done [#allocation4], 128
    $region25: #{tpu_custom_call.1} parent=1 // pred_fallthru
      _
    // Predicated region
    $region26: #{tpu_custom_call.1} parent=1 // pred_check
      _
    $region27: #{tpu_custom_call.1} parent=1 // pred_check_branch
      %47 = sbr.rel (0) target = $region29
    $region28: #{tpu_custom_call.1} parent=1 // pred_region
      %48 = dma.done [#allocation7], 256
    $region29: #{tpu_custom_call.1} parent=1 // pred_fallthru
      _
    %p50 = scmp.eq.s32.totalorder 0, 0
    // Predicated region
    $region30: #{tpu_custom_call.1} parent=1 // pred_check
      %p51 = pneg %p50
    $region31: #{tpu_custom_call.1} parent=1 // pred_check_branch
      %53 = sbr.rel (%p51) target = $region33
    $region32: #{tpu_custom_call.1} parent=1 // pred_region
      %vm54 = vcmask 785408
      %55 = vst.msk [vmem:[#allocation2] sm:$0xff] %vm54, 0.0
      %56 = vst.msk [vmem:[#allocation2 + $0x8] sm:$0xff] %vm54, 0.0
    $region33: #{tpu_custom_call.1} parent=1 // pred_fallthru
      _
    %v57 = vld [vmem:[#allocation3] sm:$0xf]
    %v58 = vld [vmem:[#allocation3 + $0x4] sm:$0xf]
    %v59 = vunpack.c.l.bf16 %v57
    %v60 = vunpack.c.l.bf16 %v58
    %vm61 = vcmask 261120
    %v62 = vsel %vm61, %v59, 0.0
    %63 = vadd.xlane.f32.xlu0 %v62
    %v64 = vpop.xlane.xlu0 %63
    %v65 = vsel %vm61, %v60, 0.0
    %66 = vadd.xlane.f32.xlu0 %v65
    %v67 = vpop.xlane.xlu0 %66
    %v68 = vrcp.pop 32.0
    %v69 = vmul.f32 %v64, %v68
    %v70 = vmul.f32 %v67, %v68
    %v71 = vsub.f32 %v59, %v69
    %v72 = vsub.f32 %v60, %v70
    %v73 = vmul.f32 %v71, %v71
    %v74 = vmul.f32 %v72, %v72
    %v75 = vsel %vm61, %v73, 0.0
    %76 = vadd.xlane.f32.xlu0 %v75
    %v77 = vpop.xlane.xlu0 %76
    %v78 = vsel %vm61, %v74, 0.0
    %79 = vadd.xlane.f32.xlu0 %v78
    %v80 = vpop.xlane.xlu0 %79
    %v81 = vmul.f32 %v77, %v68
    %v82 = vmul.f32 %v80, %v68
    %v83 = vadd.f32 %v81, 1e-05
    %v84 = vadd.f32 %v82, 1e-05
    %v85 = vrsqrt.pop %v83
    %v86 = vrsqrt.pop %v84
    %v87 = vmul.f32 %v71, %v85
    %v88 = vmul.f32 %v72, %v86
    %v89 = vld [vmem:[%s3] sm:$0x1]
    %v91 = vlaneseq
    %v92 = vshrl.u32 %v91, 7
    %v93 = vsub.s32 0, %v92
    %v94 = vrot.slane %v89, %v93
    %v96 = vmul.f32 %v87, %v94
    %v97 = vmul.f32 %v88, %v94
    %v98 = vld [vmem:[%s4] sm:$0x1]
    %v100 = vlaneseq
    %v101 = vshrl.u32 %v100, 7
    %v102 = vsub.s32 0, %v101
    %v103 = vrot.slane %v98, %v102
    %v105 = vadd.f32 %v96, %v103
    %v106 = vadd.f32 %v97, %v103
    %v107 = vpack.c.bf16 %v106, %v105
    %v108 = vld [vmem:[#allocation2] sm:$0xff]
    %v109 = vld [vmem:[#allocation2 + $0x8] sm:$0xff]
    %v110 = vld [vmem:[#allocation6] sm:$0xf]
    %v111 = vld [vmem:[#allocation6 + $0x4] sm:$0xf]
    %v112 = vld [vmem:[#allocation6 + $0x8] sm:$0xf]
    %v113 = vld [vmem:[#allocation6 + $0xc] sm:$0xf]
    %v118 = vunpack.c.l.b16 %v110
    %v119 = vunpack.c.l.b16 %v111
    %v120 = vunpack.c.l.b16 %v112
    %v121 = vunpack.c.l.b16 %v113
    %v122 = vpack.c.b16 %v119, %v118
    %v123 = vpack.c.b16 %v121, %v120
    %v127 = vsel %vm61, %v107, 0
    %129 = vmatprep.subr.bf16.mxu0 0
    %130 = vmatpush1.bf16.msra.mxu0 %v122
    %131 = vmatprep.subr.bf16.mxu0 0
    %132 = vmatpush1.bf16.msra.mxu0 %v123
    %133 = vmatprep.subr.bf16.mxu0 0
    %134 = vmatpush1.bf16.msra.mxu0 0
    %135 = vmatprep.subr.bf16.mxu0 0
    %136 = vmatpush1.bf16.msra.mxu0 0
    %137 = vmatprep.subr.bf16.mxu0 0
    %138 = vmatpush1.bf16.msra.mxu0 0
    %139 = vmatprep.subr.bf16.mxu0 0
    %140 = vmatpush1.bf16.msra.mxu0 0
    %141 = vmatprep.subr.bf16.mxu0 0
    %142 = vmatpush1.bf16.msra.mxu0 0
    %143 = vmatprep.subr.bf16.mxu0 0
    %144 = vmatpush1.bf16.msra.mxu0 0
    %145 = vmatprep.subr.bf16.mxu0 0
    %146 = vmatpush1.bf16.msra.mxu0 0
    %147 = vmatprep.subr.bf16.mxu0 0
    %148 = vmatpush1.bf16.msra.mxu0 0
    %149 = vmatprep.subr.bf16.mxu0 0
    %150 = vmatpush1.bf16.msra.mxu0 0
    %151 = vmatprep.subr.bf16.mxu0 0
    %152 = vmatpush1.bf16.msra.mxu0 0
    %153 = vmatprep.subr.bf16.mxu0 0
    %154 = vmatpush1.bf16.msra.mxu0 0
    %155 = vmatprep.subr.bf16.mxu0 0
    %156 = vmatpush1.bf16.msra.mxu0 0
    %157 = vmatprep.subr.bf16.mxu0 0
    %158 = vmatpush1.bf16.msra.mxu0 0
    %159 = vmatprep.subr.bf16.mxu0 0
    %160 = vmatpush1.bf16.msra.mxu0 0
    %161 = vmatprep.mubr.bf16.mxu0 0
    %162 = vmatmul.mubr.bf16.gmra.mrb[0].mxu0 %v127
    %v163 = vpop.f32.mrb[0].mxu0
    %v164 = vadd.f32 0.0, %v163
    %v165 = vpop.f32.mrb[0].mxu0
    %v166 = vpop.f32.mrb[0].mxu0
    %v167 = vadd.f32 0.0, %v166
    %v168 = vpop.f32.mrb[0].mxu0
    %169 = vdwg.mxu0
    %v170 = vadd.f32 %v108, %v164
    %v171 = vadd.f32 %v109, %v167
    %vm172 = vcmask 785408
    %173 = vst.msk [vmem:[#allocation2] sm:$0xff] %vm172, %v170
    %174 = vst.msk [vmem:[#allocation2 + $0x8] sm:$0xff] %vm172, %v171
    // Predicated region
    $region34: #{tpu_custom_call.1} parent=1 // pred_check
      %p175 = pneg %p50
    $region35: #{tpu_custom_call.1} parent=1 // pred_check_branch
      %177 = sbr.rel (%p175) target = $region37
    $region36: #{tpu_custom_call.1} parent=1 // pred_region
      %v178 = vld [vmem:[#allocation2] sm:$0xff]
      %v179 = vld [vmem:[#allocation2 + $0x8] sm:$0xff]
      %v180 = vld [vmem:[%s2] sm:$0x1]
      %v182 = vlaneseq
      %v183 = vshrl.u32 %v182, 7
      %v184 = vsub.s32 0, %v183
      %v185 = vrot.slane %v180, %v184
      %v187 = vadd.f32 %v178, %v185
      %v188 = vadd.f32 %v179, %v185
      %v189 = vpack.c.bf16 %v188, %v187
      %v191 = vunpack.c.l.b16 %v189
      %v192 = vunpack.c.h.b16 %v189
      %v193 = vpack.c.b16 %v191, %v191
      %v194 = vpack.c.b16 %v192, %v192
      %vm197 = vcmask 781312
      %198 = vst.msk [vmem:[#allocation8] sm:$0xf] %vm197, %v193
      %199 = vst.msk [vmem:[#allocation8 + $0x4] sm:$0xf] %vm197, %v194
    $region37: #{tpu_custom_call.1} parent=1 // pred_fallthru
      _
    // Predicated region
    $region38: #{tpu_custom_call.1} parent=1 // pred_check
      _
    $region39: #{tpu_custom_call.1} parent=1 // pred_check_branch
      %201 = sbr.rel (0) target = $region41
    $region40: #{tpu_custom_call.1} parent=1 // pred_region
      %s203 = ssub.s32 128, 128
      %204 = vsyncadd [#allocation5], %s203
      %s205 = sshll.u32 [#allocation8], 4
      %s206 = int_to_ptr.vmem [resolvable:$true] %s205
      %211 = dma.vmem_to_hbm [thread:$0]  %s206, 128, %s5, [#allocation5], 64, 64, 4
    $region41: #{tpu_custom_call.1} parent=1 // pred_fallthru
      _
    // Predicated region
    $region42: #{tpu_custom_call.1} parent=1 // pred_check
      _
    $region43: #{tpu_custom_call.1} parent=1 // pred_check_branch
      %213 = sbr.rel (0) target = $region45
    $region44: #{tpu_custom_call.1} parent=1 // pred_region
      %214 = dma.done [#allocation5], 128
    $region45: #{tpu_custom_call.1} parent=1 // pred_fallthru
      _
    %215 = vsyncpa [#allocation4], 1
    %216 = vsyncpa [#allocation7], 1
    %217 = vsyncpa [#allocation5], 1

</llo_original>
